<compile_context>
chip_gen: v6e
topology: v6e:2x2x1
jax: 0.10.0
libtpu: 0.0.40
codegen_flags: <defaults>
</compile_context>

<pallas_src>
import jax
import jax.numpy as jnp
from jax.experimental import pallas as pl
from jax.experimental.pallas import tpu as pltpu


def _itemcode_gather_kernel(codes_ref, slabs_ref, out_ref):
    # codes_ref: (M, T)          int32, per-byte codes for T tokens (lane-dense);
    #                            -1 marks masked (input_id == 0) / padded tokens.
    # slabs_ref: (M, P*Dsub, V)  bf16, per byte: centroids[i]^T split into P
    #                            hi/mid/lo bf16 residual slabs stacked on rows.
    # out_ref:   (M*Dsub, T)     f32, transposed output block (lane-dense stores).
    m, t = codes_ref.shape
    _, pd, v = slabs_ref.shape
    dsub = out_ref.shape[0] // m
    p = pd // dsub

    # Same iota for every byte; hoisted (JAX does not CSE broadcasts).
    col = jax.lax.broadcasted_iota(jnp.int32, (v, t), 0)

    for i in range(m):                         # static unroll over code bytes
        # One-hot^T (V, T): compare in int32 (v5e-friendly), one cast to bf16.
        onehot_t = (codes_ref[i:i + 1, :] == col).astype(jnp.bfloat16)
        # Single dot per byte: the one-hot is the pushed RHS (weights); the
        # P*Dsub centroid slab rows stream through it as the LHS.
        r = jnp.dot(slabs_ref[i], onehot_t,
                    preferred_element_type=jnp.float32)        # (P*Dsub, T)
        # Sum the P slab row-groups; start from the first (no zeros + add).
        acc = r[0:dsub, :]
        for s in range(1, p):
            acc = acc + r[s * dsub:(s + 1) * dsub, :]
        out_ref[i * dsub:(i + 1) * dsub, :] = acc


def _round_up(x, mult):
    return ((x + mult - 1) // mult) * mult


def build_centroid_slabs(centroids, n_splits=3):
    """(M, V, Dsub) f32 -> (M, n_splits*Dsub, V) bf16 slab table.

    centroids[i]^T split into n_splits bf16 residual slabs (hi, mid, lo, ...)
    stacked along rows; 3 slabs reproduce f32 to ~1e-6 relative.  Build ONCE
    at module init / after assign_codes_* and pass the result into
    itemcode_jpq_forward (hoisted out of the per-call forward path).
    """
    cent_t = jnp.swapaxes(centroids.astype(jnp.float32), 1, 2)     # (M, Dsub, V)
    slabs, resid = [], cent_t
    for _ in range(n_splits):
        hi = resid.astype(jnp.bfloat16)
        slabs.append(hi)
        resid = resid - hi.astype(jnp.float32)
    return jnp.concatenate(slabs, axis=1)                          # (M, P*Dsub, V)


def itemcode_jpq_forward(input_ids, item_codes, cent_slabs, *,
                         n_splits=3, tile_tokens=512):
    """input_ids: (B, S) int, item_codes: (num_items, M) int,
    cent_slabs: (M, n_splits*Dsub, 256) bf16 from build_centroid_slabs
    ->  (B, S, M*Dsub) float32.

    tile_tokens can be raised (1024+) on v5e/v6e (128 MiB VMEM); keep modest
    on v7x (64 MiB physical VMEM per TensorCore).
    """
    b, s = input_ids.shape
    m, pd, v = cent_slabs.shape
    dsub = pd // n_splits
    w = m * dsub
    n = b * s

    # ---- wrapper glue (cheap, fused by XLA) --------------------------------
    # TODO(synk): the item_codes row gather could move in-kernel via
    # scalar-prefetched input_ids + pl.Element row BlockSpec once the kernel
    # is HBM-bound; it is small next to the output traffic today.
    ids = input_ids.reshape(n).astype(jnp.int32)
    codes = jnp.minimum(item_codes[ids].astype(jnp.int32), v - 1)   # clamp(max=V-1)
    # torch clamp has no lower bound; a negative code indexes centroids with
    # Python wraparound -> replicate for codes in [-V, -1].
    codes = jnp.where(codes < 0, codes + v, codes)
    # Fold the padding mask into the codes: -1 matches no one-hot column.
    codes = jnp.where((ids == 0)[:, None], -1, codes)

    # ---- token tiling (token axis on lanes) --------------------------------
    n128 = _round_up(max(n, 1), 128)
    tr = min(_round_up(tile_tokens, 128), n128)
    # Prefer >= 2 grid steps so both v7x TensorCores get work.
    if n128 // tr < 2 and n128 >= 256:
        tr = _round_up(pl.cdiv(n128, 2), 128)
    n_pad = _round_up(n, tr)

    codes_t = jnp.pad(codes, ((0, n_pad - n), (0, 0)),
                      constant_values=-1).T                        # (M, N_pad)

    # ---- VMEM budget from actual buffer sizes (+ headroom for temporaries) --
    table_bytes = m * pd * v * 2                      # slab table (~raw size)
    tile_bytes = 2 * (m * tr * 4 + w * tr * 4) + 2 * table_bytes   # dbl-buffered
    scratch_bytes = 2 * (v * tr * 2 + pd * tr * 4)    # one-hot + dot temporaries
    vmem_limit = int(min(64 << 20, max(16 << 20, 2 * (tile_bytes + scratch_bytes))))

    out_t = pl.pallas_call(
        _itemcode_gather_kernel,
        out_shape=jax.ShapeDtypeStruct((w, n_pad), jnp.float32),
        grid_spec=pltpu.PrefetchScalarGridSpec(
            num_scalar_prefetch=0,
            grid=(n_pad // tr,),
            in_specs=[
                pl.BlockSpec((m, tr), lambda r: (0, r)),         # codes^T tile
                pl.BlockSpec((m, pd, v), lambda r: (0, 0, 0)),   # whole slab table
            ],
            out_specs=pl.BlockSpec((w, tr), lambda r: (0, r)),   # transposed out tile
        ),
        compiler_params=pltpu.CompilerParams(
            dimension_semantics=("parallel",),    # token tiles carry nothing
            vmem_limit_bytes=vmem_limit,
        ),
    )(codes_t, cent_slabs)

    # (E, N_pad) -> (N, E): one wrapper-side transpose keeps every in-kernel
    # store lane-dense.  TODO(synk): switch to an in-kernel XLU transpose if
    # this extra output pass ever shows up in profiles.
    return out_t[:, :n].T.reshape(b, s, w)


if __name__ == "__main__":
    # Module hyper-parameters (small, consistent with the PyTorch __init__).
    pq_m = 4
    embedding_size = 32
    num_items = 50
    sequence_length = 8
    batch_size = 2

    sub_embedding_size = embedding_size // pq_m               # 8
    item_code_bytes = embedding_size // sub_embedding_size    # 4
    vals_per_dim = 256

    key = jax.random.PRNGKey(0)
    k_cent, k_codes, k_ids = jax.random.split(key, 3)

    # Parameters: randn centroids with centroids[:, 0, :] = 0; random byte
    # codes stand in for a later assign_codes_* call.
    centroids = jax.random.normal(
        k_cent, (item_code_bytes, vals_per_dim, sub_embedding_size),
        dtype=jnp.float32)
    centroids = centroids.at[:, 0, :].set(0.0)
    item_codes = jax.random.randint(
        k_codes, (num_items, item_code_bytes), 0, vals_per_dim, dtype=jnp.int32)

    # Example input ids with some zeros to exercise the padding mask.
    input_ids = jax.random.randint(
        k_ids, (batch_size, sequence_length), 0, num_items, dtype=jnp.int32)
    input_ids = input_ids.at[0, 0].set(0)
    input_ids = input_ids.at[1, 3].set(0)

    # One-time slab-table build (hoisted out of the per-call forward path).
    cent_slabs = jax.block_until_ready(build_centroid_slabs(centroids, n_splits=3))

    fwd = jax.jit(itemcode_jpq_forward,
                  static_argnames=("n_splits", "tile_tokens"))
    out = jax.block_until_ready(fwd(input_ids, item_codes, cent_slabs))

    # Pure-JAX reference for correctness.
    codes_ref = jnp.minimum(item_codes[input_ids], vals_per_dim - 1)   # (B, S, M)
    byte_idx = jnp.arange(item_code_bytes)[None, None, :]
    gathered = centroids[byte_idx, codes_ref]                          # (B, S, M, Dsub)
    ref = gathered.reshape(batch_size, sequence_length, embedding_size)
    ref = jnp.where((input_ids == 0)[..., None], 0.0, ref)

    assert out.shape == (batch_size, sequence_length, embedding_size)
    assert out.dtype == jnp.float32
    assert jnp.allclose(out, ref, atol=1e-5, rtol=1e-5), \
        float(jnp.max(jnp.abs(out - ref)))

    print("KERNEL_OK")
</pallas_src>

<mosaic_0001>
module attributes {stable_mosaic.version = 11 : i64} {
  func.func @_itemcode_gather_kernel(%arg0: i32, %arg1: memref<4x128xi32, #tpu.memory_space<vmem>>, %arg2: memref<4x24x256xbf16, #tpu.memory_space<vmem>>, %arg3: memref<32x128xf32, #tpu.memory_space<vmem>>) attributes {dimension_semantics = [#tpu.dimension_semantics<parallel>], iteration_bounds = array<i64: 1>, scalar_prefetch = 0 : i64, scratch_operands = 0 : i64, tpu.core_type = #tpu.core_type<tc>, window_params = [{transform_indices = @transform_0, window_bounds = array<i64: 4, 128>}, {pipeline_mode = #tpu.pipeline_mode<synchronous>, transform_indices = @transform_1, window_bounds = array<i64: 4, 24, 256>}, {transform_indices = @transform_2, window_bounds = array<i64: 32, 128>}]} {
    %0 = tpu.iota {dimensions = array<i32: 0>} : vector<256x128xi32>
    %c0 = arith.constant 0 : index
    %c0_0 = arith.constant 0 : index
    %1 = vector.load %arg1[%c0, %c0_0] : memref<4x128xi32, #tpu.memory_space<vmem>>, vector<1x128xi32>
    %2 = vector.broadcast %1 : vector<1x128xi32> to vector<256x128xi32>
    %3 = arith.cmpi eq, %2, %0 : vector<256x128xi32>
    %4 = arith.extui %3 : vector<256x128xi1> to vector<256x128xi32>
    %5 = arith.sitofp %4 : vector<256x128xi32> to vector<256x128xf32>
    %6 = arith.truncf %5 : vector<256x128xf32> to vector<256x128xbf16>
    %c0_1 = arith.constant 0 : index
    %c0_2 = arith.constant 0 : index
    %c0_3 = arith.constant 0 : index
    %7 = vector.load %arg2[%c0_1, %c0_2, %c0_3] : memref<4x24x256xbf16, #tpu.memory_space<vmem>>, vector<1x24x256xbf16>
    %8 = vector.shape_cast %7 : vector<1x24x256xbf16> to vector<24x256xbf16>
    %cst = arith.constant dense<0.000000e+00> : vector<24x128xf32>
    %9 = tpu.matmul %8, %6, %cst {dimension_numbers = #tpu.dot_dimension_numbers<[1], [0], [0], [1], [0, 0, 1, 1], [], []>} : vector<24x256xbf16>, vector<256x128xbf16>, vector<24x128xf32> -> vector<24x128xf32>
    %10 = vector.extract_strided_slice %9 {offsets = [0, 0], sizes = [8, 128], strides = [1, 1]} : vector<24x128xf32> to vector<8x128xf32>
    %11 = vector.extract_strided_slice %9 {offsets = [8, 0], sizes = [8, 128], strides = [1, 1]} : vector<24x128xf32> to vector<8x128xf32>
    %12 = arith.addf %10, %11 : vector<8x128xf32>
    %13 = vector.extract_strided_slice %9 {offsets = [16, 0], sizes = [8, 128], strides = [1, 1]} : vector<24x128xf32> to vector<8x128xf32>
    %14 = arith.addf %12, %13 : vector<8x128xf32>
    %c0_4 = arith.constant 0 : index
    %c0_5 = arith.constant 0 : index
    %15 = vector.load %arg3[%c0_4, %c0_5] : memref<32x128xf32, #tpu.memory_space<vmem>>, vector<8x128xf32>
    tpu.vector_store %arg3[%c0_4, %c0_5], %14 {strides = array<i32>} : memref<32x128xf32, #tpu.memory_space<vmem>>, vector<8x128xf32>,
    %c1 = arith.constant 1 : index
    %c0_6 = arith.constant 0 : index
    %16 = vector.load %arg1[%c1, %c0_6] : memref<4x128xi32, #tpu.memory_space<vmem>>, vector<1x128xi32>
    %17 = vector.broadcast %16 : vector<1x128xi32> to vector<256x128xi32>
    %18 = arith.cmpi eq, %17, %0 : vector<256x128xi32>
    %19 = arith.extui %18 : vector<256x128xi1> to vector<256x128xi32>
    %20 = arith.sitofp %19 : vector<256x128xi32> to vector<256x128xf32>
    %21 = arith.truncf %20 : vector<256x128xf32> to vector<256x128xbf16>
    %c1_7 = arith.constant 1 : index
    %c0_8 = arith.constant 0 : index
    %c0_9 = arith.constant 0 : index
    %22 = vector.load %arg2[%c1_7, %c0_8, %c0_9] : memref<4x24x256xbf16, #tpu.memory_space<vmem>>, vector<1x24x256xbf16>
    %23 = vector.shape_cast %22 : vector<1x24x256xbf16> to vector<24x256xbf16>
    %cst_10 = arith.constant dense<0.000000e+00> : vector<24x128xf32>
    %24 = tpu.matmul %23, %21, %cst_10 {dimension_numbers = #tpu.dot_dimension_numbers<[1], [0], [0], [1], [0, 0, 1, 1], [], []>} : vector<24x256xbf16>, vector<256x128xbf16>, vector<24x128xf32> -> vector<24x128xf32>
    %25 = vector.extract_strided_slice %24 {offsets = [0, 0], sizes = [8, 128], strides = [1, 1]} : vector<24x128xf32> to vector<8x128xf32>
    %26 = vector.extract_strided_slice %24 {offsets = [8, 0], sizes = [8, 128], strides = [1, 1]} : vector<24x128xf32> to vector<8x128xf32>
    %27 = arith.addf %25, %26 : vector<8x128xf32>
    %28 = vector.extract_strided_slice %24 {offsets = [16, 0], sizes = [8, 128], strides = [1, 1]} : vector<24x128xf32> to vector<8x128xf32>
    %29 = arith.addf %27, %28 : vector<8x128xf32>
    %c8 = arith.constant 8 : index
    %c0_11 = arith.constant 0 : index
    %30 = vector.load %arg3[%c8, %c0_11] : memref<32x128xf32, #tpu.memory_space<vmem>>, vector<8x128xf32>
    tpu.vector_store %arg3[%c8, %c0_11], %29 {strides = array<i32>} : memref<32x128xf32, #tpu.memory_space<vmem>>, vector<8x128xf32>,
    %c2 = arith.constant 2 : index
    %c0_12 = arith.constant 0 : index
    %31 = vector.load %arg1[%c2, %c0_12] : memref<4x128xi32, #tpu.memory_space<vmem>>, vector<1x128xi32>
    %32 = vector.broadcast %31 : vector<1x128xi32> to vector<256x128xi32>
    %33 = arith.cmpi eq, %32, %0 : vector<256x128xi32>
    %34 = arith.extui %33 : vector<256x128xi1> to vector<256x128xi32>
    %35 = arith.sitofp %34 : vector<256x128xi32> to vector<256x128xf32>
    %36 = arith.truncf %35 : vector<256x128xf32> to vector<256x128xbf16>
    %c2_13 = arith.constant 2 : index
    %c0_14 = arith.constant 0 : index
    %c0_15 = arith.constant 0 : index
    %37 = vector.load %arg2[%c2_13, %c0_14, %c0_15] : memref<4x24x256xbf16, #tpu.memory_space<vmem>>, vector<1x24x256xbf16>
    %38 = vector.shape_cast %37 : vector<1x24x256xbf16> to vector<24x256xbf16>
    %cst_16 = arith.constant dense<0.000000e+00> : vector<24x128xf32>
    %39 = tpu.matmul %38, %36, %cst_16 {dimension_numbers = #tpu.dot_dimension_numbers<[1], [0], [0], [1], [0, 0, 1, 1], [], []>} : vector<24x256xbf16>, vector<256x128xbf16>, vector<24x128xf32> -> vector<24x128xf32>
    %40 = vector.extract_strided_slice %39 {offsets = [0, 0], sizes = [8, 128], strides = [1, 1]} : vector<24x128xf32> to vector<8x128xf32>
    %41 = vector.extract_strided_slice %39 {offsets = [8, 0], sizes = [8, 128], strides = [1, 1]} : vector<24x128xf32> to vector<8x128xf32>
    %42 = arith.addf %40, %41 : vector<8x128xf32>
    %43 = vector.extract_strided_slice %39 {offsets = [16, 0], sizes = [8, 128], strides = [1, 1]} : vector<24x128xf32> to vector<8x128xf32>
    %44 = arith.addf %42, %43 : vector<8x128xf32>
    %c16 = arith.constant 16 : index
    %c0_17 = arith.constant 0 : index
    %45 = vector.load %arg3[%c16, %c0_17] : memref<32x128xf32, #tpu.memory_space<vmem>>, vector<8x128xf32>
    tpu.vector_store %arg3[%c16, %c0_17], %44 {strides = array<i32>} : memref<32x128xf32, #tpu.memory_space<vmem>>, vector<8x128xf32>,
    %c3 = arith.constant 3 : index
    %c0_18 = arith.constant 0 : index
    %46 = vector.load %arg1[%c3, %c0_18] : memref<4x128xi32, #tpu.memory_space<vmem>>, vector<1x128xi32>
    %47 = vector.broadcast %46 : vector<1x128xi32> to vector<256x128xi32>
    %48 = arith.cmpi eq, %47, %0 : vector<256x128xi32>
    %49 = arith.extui %48 : vector<256x128xi1> to vector<256x128xi32>
    %50 = arith.sitofp %49 : vector<256x128xi32> to vector<256x128xf32>
    %51 = arith.truncf %50 : vector<256x128xf32> to vector<256x128xbf16>
    %c3_19 = arith.constant 3 : index
    %c0_20 = arith.constant 0 : index
    %c0_21 = arith.constant 0 : index
    %52 = vector.load %arg2[%c3_19, %c0_20, %c0_21] : memref<4x24x256xbf16, #tpu.memory_space<vmem>>, vector<1x24x256xbf16>
    %53 = vector.shape_cast %52 : vector<1x24x256xbf16> to vector<24x256xbf16>
    %cst_22 = arith.constant dense<0.000000e+00> : vector<24x128xf32>
    %54 = tpu.matmul %53, %51, %cst_22 {dimension_numbers = #tpu.dot_dimension_numbers<[1], [0], [0], [1], [0, 0, 1, 1], [], []>} : vector<24x256xbf16>, vector<256x128xbf16>, vector<24x128xf32> -> vector<24x128xf32>
    %55 = vector.extract_strided_slice %54 {offsets = [0, 0], sizes = [8, 128], strides = [1, 1]} : vector<24x128xf32> to vector<8x128xf32>
    %56 = vector.extract_strided_slice %54 {offsets = [8, 0], sizes = [8, 128], strides = [1, 1]} : vector<24x128xf32> to vector<8x128xf32>
    %57 = arith.addf %55, %56 : vector<8x128xf32>
    %58 = vector.extract_strided_slice %54 {offsets = [16, 0], sizes = [8, 128], strides = [1, 1]} : vector<24x128xf32> to vector<8x128xf32>
    %59 = arith.addf %57, %58 : vector<8x128xf32>
    %c24 = arith.constant 24 : index
    %c0_23 = arith.constant 0 : index
    %60 = vector.load %arg3[%c24, %c0_23] : memref<32x128xf32, #tpu.memory_space<vmem>>, vector<8x128xf32>
    tpu.vector_store %arg3[%c24, %c0_23], %59 {strides = array<i32>} : memref<32x128xf32, #tpu.memory_space<vmem>>, vector<8x128xf32>,
    return
  }
  func.func @transform_0(%arg0: i32) -> (i32, i32) {
    %c0_i32 = arith.constant 0 : i32
    %c0_i32_0 = arith.constant 0 : i32
    return %c0_i32, %arg0 : i32, i32
  }
  func.func @transform_1(%arg0: i32) -> (i32, i32, i32) {
    %c0_i32 = arith.constant 0 : i32
    %c0_i32_0 = arith.constant 0 : i32
    %c0_i32_1 = arith.constant 0 : i32
    %c0_i32_2 = arith.constant 0 : i32
    return %c0_i32, %c0_i32_0, %c0_i32_1 : i32, i32, i32
  }
  func.func @transform_2(%arg0: i32) -> (i32, i32) {
    %c0_i32 = arith.constant 0 : i32
    %c0_i32_0 = arith.constant 0 : i32
    return %c0_i32, %arg0 : i32, i32
  }
}

</mosaic_0001>

<llo_original>
// kernel: itemcode_jpq_forward.1
$region0: #{itemcode_jpq_forward.1}
  #allocation0 [shape = 'u32[]', space=smem, size = 0x4, offset = 0x4, fixed_abs, tag = 'smem constant byte address 0x4 - core index']
  #allocation1 [shape = 'u32[144,128]{1,0:T(1,128)}', space=vmem, size = 0x12000, scoped, tag = 'internal scratch']
  %s0 = inlined_call_operand.vmem [shape: s32[4,128], index: 0, kind: input, shape index: {}]
  %s1 = inlined_call_operand.vmem [shape: bf16[4,24,256], index: 1, kind: input, shape index: {}]
  %s2 = inlined_call_operand.vmem [shape: f32[32,128], index: 2, kind: output, shape index: {}]
  %s3 = sld [smem:[#allocation0]]
  $region18: #{itemcode_jpq_forward.1} parent=0
    _
  %s5 = ssub.s32 1, %s3
  %s6 = scalar_select 0, %s5, %s3
  // Predicated region
  $region2: #{itemcode_jpq_forward.1} parent=0 // pred_check
    _
  $region3: #{itemcode_jpq_forward.1} parent=0 // pred_check_branch
    %8 = sbr.rel (0) target = $region5
  $region4: #{itemcode_jpq_forward.1} parent=0 // pred_region
    _
  $region5: #{itemcode_jpq_forward.1} parent=0 // pred_fallthru
    _
  // Predicated region
  $region6: #{itemcode_jpq_forward.1} parent=0 // pred_check
    _
  $region7: #{itemcode_jpq_forward.1} parent=0 // pred_check_branch
    %10 = sbr.rel (0) target = $region9
  $region8: #{itemcode_jpq_forward.1} parent=0 // pred_region
    _
  $region9: #{itemcode_jpq_forward.1} parent=0 // pred_fallthru
    _
  %v12 = vlaneseq
  %v13 = vshrl.u32 %v12, 7
  %v14 = vadd.s32 %v13, 8
  %v15 = vadd.s32 %v13, 16
  %v16 = vadd.s32 %v13, 24
  %v17 = vadd.s32 %v13, 32
  %v18 = vadd.s32 %v13, 40
  %v19 = vadd.s32 %v13, 48
  %v20 = vadd.s32 %v13, 56
  %v21 = vadd.s32 %v13, 64
  %v22 = vadd.s32 %v13, 72
  %v23 = vadd.s32 %v13, 80
  %v24 = vadd.s32 %v13, 88
  %v25 = vadd.s32 %v13, 96
  %v26 = vadd.s32 %v13, 104
  %v27 = vadd.s32 %v13, 112
  %v28 = vadd.s32 %v13, 120
  %v29 = vadd.s32 %v13, 128
  %v30 = vadd.s32 %v13, 136
  %v31 = vadd.s32 %v13, 144
  %v32 = vadd.s32 %v13, 152
  %v33 = vadd.s32 %v13, 160
  %v34 = vadd.s32 %v13, 168
  %v35 = vadd.s32 %v13, 176
  %v36 = vadd.s32 %v13, 184
  %v37 = vadd.s32 %v13, 192
  %v38 = vadd.s32 %v13, 200
  %v39 = vadd.s32 %v13, 208
  %v40 = vadd.s32 %v13, 216
  %v41 = vadd.s32 %v13, 224
  %v42 = vadd.s32 %v13, 232
  %v43 = vadd.s32 %v13, 240
  %v44 = vadd.s32 %v13, 248
  %v45 = vld [vmem:[%s0] sm:$0x1]
  %v46 = vlaneseq
  %v47 = vshrl.u32 %v46, 7
  %v48 = vsub.s32 0, %v47
  %v49 = vrot.slane %v45, %v48
  %vm50 = vcmp.eq.s32.totalorder %v49, %v13
  %vm51 = vcmp.eq.s32.totalorder %v49, %v14
  %vm52 = vcmp.eq.s32.totalorder %v49, %v15
  %vm53 = vcmp.eq.s32.totalorder %v49, %v16
  %vm54 = vcmp.eq.s32.totalorder %v49, %v17
  %vm55 = vcmp.eq.s32.totalorder %v49, %v18
  %vm56 = vcmp.eq.s32.totalorder %v49, %v19
  %vm57 = vcmp.eq.s32.totalorder %v49, %v20
  %vm58 = vcmp.eq.s32.totalorder %v49, %v21
  %vm59 = vcmp.eq.s32.totalorder %v49, %v22
  %vm60 = vcmp.eq.s32.totalorder %v49, %v23
  %vm61 = vcmp.eq.s32.totalorder %v49, %v24
  %vm62 = vcmp.eq.s32.totalorder %v49, %v25
  %vm63 = vcmp.eq.s32.totalorder %v49, %v26
  %vm64 = vcmp.eq.s32.totalorder %v49, %v27
  %vm65 = vcmp.eq.s32.totalorder %v49, %v28
  %vm66 = vcmp.eq.s32.totalorder %v49, %v29
  %vm67 = vcmp.eq.s32.totalorder %v49, %v30
  %vm68 = vcmp.eq.s32.totalorder %v49, %v31
  %vm69 = vcmp.eq.s32.totalorder %v49, %v32
  %vm70 = vcmp.eq.s32.totalorder %v49, %v33
  %vm71 = vcmp.eq.s32.totalorder %v49, %v34
  %vm72 = vcmp.eq.s32.totalorder %v49, %v35
  %vm73 = vcmp.eq.s32.totalorder %v49, %v36
  %vm74 = vcmp.eq.s32.totalorder %v49, %v37
  %vm75 = vcmp.eq.s32.totalorder %v49, %v38
  %vm76 = vcmp.eq.s32.totalorder %v49, %v39
  %vm77 = vcmp.eq.s32.totalorder %v49, %v40
  %vm78 = vcmp.eq.s32.totalorder %v49, %v41
  %vm79 = vcmp.eq.s32.totalorder %v49, %v42
  %vm80 = vcmp.eq.s32.totalorder %v49, %v43
  %vm81 = vcmp.eq.s32.totalorder %v49, %v44
  %v82 = vsel %vm50, 1, 0
  %v83 = vsel %vm51, 1, 0
  %v84 = vsel %vm52, 1, 0
  %v85 = vsel %vm53, 1, 0
  %v86 = vsel %vm54, 1, 0
  %v87 = vsel %vm55, 1, 0
  %v88 = vsel %vm56, 1, 0
  %v89 = vsel %vm57, 1, 0
  %v90 = vsel %vm58, 1, 0
  %v91 = vsel %vm59, 1, 0
  %v92 = vsel %vm60, 1, 0
  %v93 = vsel %vm61, 1, 0
  %v94 = vsel %vm62, 1, 0
  %v95 = vsel %vm63, 1, 0
  %v96 = vsel %vm64, 1, 0
  %v97 = vsel %vm65, 1, 0
  %v98 = vsel %vm66, 1, 0
  %v99 = vsel %vm67, 1, 0
  %v100 = vsel %vm68, 1, 0
  %v101 = vsel %vm69, 1, 0
  %v102 = vsel %vm70, 1, 0
  %v103 = vsel %vm71, 1, 0
  %v104 = vsel %vm72, 1, 0
  %v105 = vsel %vm73, 1, 0
  %v106 = vsel %vm74, 1, 0
  %v107 = vsel %vm75, 1, 0
  %v108 = vsel %vm76, 1, 0
  %v109 = vsel %vm77, 1, 0
  %v110 = vsel %vm78, 1, 0
  %v111 = vsel %vm79, 1, 0
  %v112 = vsel %vm80, 1, 0
  %v113 = vsel %vm81, 1, 0
  %v114 = vcvt.s32.f32 %v82
  %v115 = vcvt.s32.f32 %v83
  %v116 = vcvt.s32.f32 %v84
  %v117 = vcvt.s32.f32 %v85
  %v118 = vcvt.s32.f32 %v86
  %v119 = vcvt.s32.f32 %v87
  %v120 = vcvt.s32.f32 %v88
  %v121 = vcvt.s32.f32 %v89
  %v122 = vcvt.s32.f32 %v90
  %v123 = vcvt.s32.f32 %v91
  %v124 = vcvt.s32.f32 %v92
  %v125 = vcvt.s32.f32 %v93
  %v126 = vcvt.s32.f32 %v94
  %v127 = vcvt.s32.f32 %v95
  %v128 = vcvt.s32.f32 %v96
  %v129 = vcvt.s32.f32 %v97
  %v130 = vcvt.s32.f32 %v98
  %v131 = vcvt.s32.f32 %v99
  %v132 = vcvt.s32.f32 %v100
  %v133 = vcvt.s32.f32 %v101
  %v134 = vcvt.s32.f32 %v102
  %v135 = vcvt.s32.f32 %v103
  %v136 = vcvt.s32.f32 %v104
  %v137 = vcvt.s32.f32 %v105
  %v138 = vcvt.s32.f32 %v106
  %v139 = vcvt.s32.f32 %v107
  %v140 = vcvt.s32.f32 %v108
  %v141 = vcvt.s32.f32 %v109
  %v142 = vcvt.s32.f32 %v110
  %v143 = vcvt.s32.f32 %v111
  %v144 = vcvt.s32.f32 %v112
  %v145 = vcvt.s32.f32 %v113
  %v146 = vpack.c.bf16 %v115, %v114
  %v147 = vpack.c.bf16 %v117, %v116
  %v148 = vpack.c.bf16 %v119, %v118
  %v149 = vpack.c.bf16 %v121, %v120
  %v150 = vpack.c.bf16 %v123, %v122
  %v151 = vpack.c.bf16 %v125, %v124
  %v152 = vpack.c.bf16 %v127, %v126
  %v153 = vpack.c.bf16 %v129, %v128
  %v154 = vpack.c.bf16 %v131, %v130
  %v155 = vpack.c.bf16 %v133, %v132
  %v156 = vpack.c.bf16 %v135, %v134
  %v157 = vpack.c.bf16 %v137, %v136
  %v158 = vpack.c.bf16 %v139, %v138
  %v159 = vpack.c.bf16 %v141, %v140
  %v160 = vpack.c.bf16 %v143, %v142
  %v161 = vpack.c.bf16 %v145, %v144
  %v162 = vld [vmem:[%s1] sm:$0xff]
  %v163 = vld [vmem:[%s1 + $0x8] sm:$0xff]
  %v164 = vld [vmem:[%s1 + $0x10] sm:$0xff]
  %v168 = vunpack.c.l.b16 %v162
  %v169 = vunpack.c.h.b16 %v162
  %v170 = vunpack.c.l.b16 %v163
  %v171 = vunpack.c.h.b16 %v163
  %v172 = vunpack.c.l.b16 %v164
  %v173 = vunpack.c.h.b16 %v164
  %v174 = vpack.c.b16 %v170, %v168
  %v175 = vpack.c.b16 %v171, %v169
  %v176 = vpack.c.b16 %v172, %v172
  %v177 = vpack.c.b16 %v173, %v173
  %182 = vmatprep.subr.bf16.mxu0 0
  %183 = vmatpush1.bf16.msra.mxu0 %v153
  %184 = vmatprep.subr.bf16.mxu0 0
  %185 = vmatpush1.bf16.msra.mxu0 %v152
  %186 = vmatprep.subr.bf16.mxu0 0
  %187 = vmatpush1.bf16.msra.mxu0 %v151
  %188 = vmatprep.subr.bf16.mxu0 0
  %189 = vmatpush1.bf16.msra.mxu0 %v150
  %190 = vmatprep.subr.bf16.mxu0 0
  %191 = vmatpush1.bf16.msra.mxu0 %v149
  %192 = vmatprep.subr.bf16.mxu0 0
  %193 = vmatpush1.bf16.msra.mxu0 %v148
  %194 = vmatprep.subr.bf16.mxu0 0
  %195 = vmatpush1.bf16.msra.mxu0 %v147
  %196 = vmatprep.subr.bf16.mxu0 0
  %197 = vmatpush1.bf16.msra.mxu0 %v146
  %198 = vmatprep.subr.bf16.mxu0 0
  %199 = vmatpush2.bf16.msra.mxu0 %v161
  %200 = vmatprep.subr.bf16.mxu0 0
  %201 = vmatpush2.bf16.msra.mxu0 %v160
  %202 = vmatprep.subr.bf16.mxu0 0
  %203 = vmatpush2.bf16.msra.mxu0 %v159
  %204 = vmatprep.subr.bf16.mxu0 0
  %205 = vmatpush2.bf16.msra.mxu0 %v158
  %206 = vmatprep.subr.bf16.mxu0 0
  %207 = vmatpush2.bf16.msra.mxu0 %v157
  %208 = vmatprep.subr.bf16.mxu0 0
  %209 = vmatpush2.bf16.msra.mxu0 %v156
  %210 = vmatprep.subr.bf16.mxu0 0
  %211 = vmatpush2.bf16.msra.mxu0 %v155
  %212 = vmatprep.subr.bf16.mxu0 0
  %213 = vmatpush2.bf16.msra.mxu0 %v154
  %214 = vmatprep.mubr.bf16.mxu0 %v175
  %215 = vmatmul.mubr.bf16.gmra.mxu0 %v174
  %v216 = vpop.f32.mrf.mxu0
  %v217 = vadd.f32 0.0, %v216
  %v218 = vpop.f32.mrf.mxu0
  %v219 = vpop.f32.mrf.mxu0
  %v220 = vadd.f32 0.0, %v219
  %v221 = vpop.f32.mrf.mxu0
  %222 = vmatprep.mubr.bf16.mxu0 %v177
  %223 = vmatmul.mubr.bf16.gmra.mxu0 %v176
  %v224 = vpop.f32.mrf.mxu0
  %v225 = vadd.f32 0.0, %v224
  %v226 = vpop.f32.mrf.mxu0
  %v227 = vpop.f32.mrf.mxu0
  %v228 = vpop.f32.mrf.mxu0
  %229 = vdwg.mxu0
  %v230 = vadd.f32 %v217, %v220
  %v231 = vadd.f32 %v230, %v225
  %232 = vst [vmem:[%s2] sm:$0xff] %v231
  %v233 = vld [vmem:[%s0 + $0x1] sm:$0x1]
  %v234 = vlaneseq
  %v235 = vshrl.u32 %v234, 7
  %v236 = vsub.s32 0, %v235
  %v237 = vrot.slane %v233, %v236
  %vm238 = vcmp.eq.s32.totalorder %v237, %v13
  %vm239 = vcmp.eq.s32.totalorder %v237, %v14
  %vm240 = vcmp.eq.s32.totalorder %v237, %v15
  %vm241 = vcmp.eq.s32.totalorder %v237, %v16
  %vm242 = vcmp.eq.s32.totalorder %v237, %v17
  %vm243 = vcmp.eq.s32.totalorder %v237, %v18
  %vm244 = vcmp.eq.s32.totalorder %v237, %v19
  %vm245 = vcmp.eq.s32.totalorder %v237, %v20
  %vm246 = vcmp.eq.s32.totalorder %v237, %v21
  %vm247 = vcmp.eq.s32.totalorder %v237, %v22
  %vm248 = vcmp.eq.s32.totalorder %v237, %v23
  %vm249 = vcmp.eq.s32.totalorder %v237, %v24
  %vm250 = vcmp.eq.s32.totalorder %v237, %v25
  %vm251 = vcmp.eq.s32.totalorder %v237, %v26
  %vm252 = vcmp.eq.s32.totalorder %v237, %v27
  %vm253 = vcmp.eq.s32.totalorder %v237, %v28
  %vm254 = vcmp.eq.s32.totalorder %v237, %v29
  %vm255 = vcmp.eq.s32.totalorder %v237, %v30
  %vm256 = vcmp.eq.s32.totalorder %v237, %v31
  %vm257 = vcmp.eq.s32.totalorder %v237, %v32
  %vm258 = vcmp.eq.s32.totalorder %v237, %v33
  %vm259 = vcmp.eq.s32.totalorder %v237, %v34
  %vm260 = vcmp.eq.s32.totalorder %v237, %v35
  %vm261 = vcmp.eq.s32.totalorder %v237, %v36
  %vm262 = vcmp.eq.s32.totalorder %v237, %v37
  %vm263 = vcmp.eq.s32.totalorder %v237, %v38
  %vm264 = vcmp.eq.s32.totalorder %v237, %v39
  %vm265 = vcmp.eq.s32.totalorder %v237, %v40
  %vm266 = vcmp.eq.s32.totalorder %v237, %v41
  %vm267 = vcmp.eq.s32.totalorder %v237, %v42
  %vm268 = vcmp.eq.s32.totalorder %v237, %v43
  %vm269 = vcmp.eq.s32.totalorder %v237, %v44
  %v270 = vsel %vm238, 1, 0
  %v271 = vsel %vm239, 1, 0
  %v272 = vsel %vm240, 1, 0
  %v273 = vsel %vm241, 1, 0
  %v274 = vsel %vm242, 1, 0
  %v275 = vsel %vm243, 1, 0
  %v276 = vsel %vm244, 1, 0
  %v277 = vsel %vm245, 1, 0
  %v278 = vsel %vm246, 1, 0
  %v279 = vsel %vm247, 1, 0
  %v280 = vsel %vm248, 1, 0
  %v281 = vsel %vm249, 1, 0
  %v282 = vsel %vm250, 1, 0
  %v283 = vsel %vm251, 1, 0
  %v284 = vsel %vm252, 1, 0
  %v285 = vsel %vm253, 1, 0
  %v286 = vsel %vm254, 1, 0
  %v287 = vsel %vm255, 1, 0
  %v288 = vsel %vm256, 1, 0
  %v289 = vsel %vm257, 1, 0
  %v290 = vsel %vm258, 1, 0
  %v291 = vsel %vm259, 1, 0
  %v292 = vsel %vm260, 1, 0
  %v293 = vsel %vm261, 1, 0
  %v294 = vsel %vm262, 1, 0
  %v295 = vsel %vm263, 1, 0
  %v296 = vsel %vm264, 1, 0
  %v297 = vsel %vm265, 1, 0
  %v298 = vsel %vm266, 1, 0
  %v299 = vsel %vm267, 1, 0
  %v300 = vsel %vm268, 1, 0
  %v301 = vsel %vm269, 1, 0
  %v302 = vcvt.s32.f32 %v270
  %v303 = vcvt.s32.f32 %v271
  %v304 = vcvt.s32.f32 %v272
  %v305 = vcvt.s32.f32 %v273
  %v306 = vcvt.s32.f32 %v274
  %v307 = vcvt.s32.f32 %v275
  %v308 = vcvt.s32.f32 %v276
  %v309 = vcvt.s32.f32 %v277
  %v310 = vcvt.s32.f32 %v278
  %v311 = vcvt.s32.f32 %v279
  %v312 = vcvt.s32.f32 %v280
  %v313 = vcvt.s32.f32 %v281
  %v314 = vcvt.s32.f32 %v282
  %v315 = vcvt.s32.f32 %v283
  %v316 = vcvt.s32.f32 %v284
  %v317 = vcvt.s32.f32 %v285
  %v318 = vcvt.s32.f32 %v286
  %v319 = vcvt.s32.f32 %v287
  %v320 = vcvt.s32.f32 %v288
  %v321 = vcvt.s32.f32 %v289
  %v322 = vcvt.s32.f32 %v290
  %v323 = vcvt.s32.f32 %v291
  %v324 = vcvt.s32.f32 %v292
  %v325 = vcvt.s32.f32 %v293
  %v326 = vcvt.s32.f32 %v294
  %v327 = vcvt.s32.f32 %v295
  %v328 = vcvt.s32.f32 %v296
  %v329 = vcvt.s32.f32 %v297
  %v330 = vcvt.s32.f32 %v298
  %v331 = vcvt.s32.f32 %v299
  %v332 = vcvt.s32.f32 %v300
  %v333 = vcvt.s32.f32 %v301
  %v334 = vpack.c.bf16 %v303, %v302
  %v335 = vpack.c.bf16 %v305, %v304
  %v336 = vpack.c.bf16 %v307, %v306
  %v337 = vpack.c.bf16 %v309, %v308
  %v338 = vpack.c.bf16 %v311, %v310
  %v339 = vpack.c.bf16 %v313, %v312
  %v340 = vpack.c.bf16 %v315, %v314
  %v341 = vpack.c.bf16 %v317, %v316
  %v342 = vpack.c.bf16 %v319, %v318
  %v343 = vpack.c.bf16 %v321, %v320
  %v344 = vpack.c.bf16 %v323, %v322
  %v345 = vpack.c.bf16 %v325, %v324
  %v346 = vpack.c.bf16 %v327, %v326
  %v347 = vpack.c.bf16 %v329, %v328
  %v348 = vpack.c.bf16 %v331, %v330
  %v349 = vpack.c.bf16 %v333, %v332
  %s350 = scalar_lea.vmem %s1, 24
  %v351 = vld [vmem:[%s350] sm:$0xff]
  %v352 = vld [vmem:[%s350 + $0x8] sm:$0xff]
  %v353 = vld [vmem:[%s350 + $0x10] sm:$0xff]
  %v357 = vunpack.c.l.b16 %v351
  %v358 = vunpack.c.h.b16 %v351
  %v359 = vunpack.c.l.b16 %v352
  %v360 = vunpack.c.h.b16 %v352
  %v361 = vunpack.c.l.b16 %v353
  %v362 = vunpack.c.h.b16 %v353
  %v363 = vpack.c.b16 %v359, %v357
  %v364 = vpack.c.b16 %v360, %v358
  %v365 = vpack.c.b16 %v361, %v361
  %v366 = vpack.c.b16 %v362, %v362
  %371 = vmatprep.subr.bf16.mxu0 0
  %372 = vmatpush1.bf16.msra.mxu0 %v341
  %373 = vmatprep.subr.bf16.mxu0 0
  %374 = vmatpush1.bf16.msra.mxu0 %v340
  %375 = vmatprep.subr.bf16.mxu0 0
  %376 = vmatpush1.bf16.msra.mxu0 %v339
  %377 = vmatprep.subr.bf16.mxu0 0
  %378 = vmatpush1.bf16.msra.mxu0 %v338
  %379 = vmatprep.subr.bf16.mxu0 0
  %380 = vmatpush1.bf16.msra.mxu0 %v337
  %381 = vmatprep.subr.bf16.mxu0 0
  %382 = vmatpush1.bf16.msra.mxu0 %v336
  %383 = vmatprep.subr.bf16.mxu0 0
  %384 = vmatpush1.bf16.msra.mxu0 %v335
  %385 = vmatprep.subr.bf16.mxu0 0
  %386 = vmatpush1.bf16.msra.mxu0 %v334
  %387 = vmatprep.subr.bf16.mxu0 0
  %388 = vmatpush2.bf16.msra.mxu0 %v349
  %389 = vmatprep.subr.bf16.mxu0 0
  %390 = vmatpush2.bf16.msra.mxu0 %v348
  %391 = vmatprep.subr.bf16.mxu0 0
  %392 = vmatpush2.bf16.msra.mxu0 %v347
  %393 = vmatprep.subr.bf16.mxu0 0
  %394 = vmatpush2.bf16.msra.mxu0 %v346
  %395 = vmatprep.subr.bf16.mxu0 0
  %396 = vmatpush2.bf16.msra.mxu0 %v345
  %397 = vmatprep.subr.bf16.mxu0 0
  %398 = vmatpush2.bf16.msra.mxu0 %v344
  %399 = vmatprep.subr.bf16.mxu0 0
  %400 = vmatpush2.bf16.msra.mxu0 %v343
  %401 = vmatprep.subr.bf16.mxu0 0
  %402 = vmatpush2.bf16.msra.mxu0 %v342
  %403 = vmatprep.mubr.bf16.mxu0 %v364
  %404 = vmatmul.mubr.bf16.gmra.mxu0 %v363
  %v405 = vpop.f32.mrf.mxu0
  %v406 = vadd.f32 0.0, %v405
  %v407 = vpop.f32.mrf.mxu0
  %v408 = vpop.f32.mrf.mxu0
  %v409 = vadd.f32 0.0, %v408
  %v410 = vpop.f32.mrf.mxu0
  %411 = vmatprep.mubr.bf16.mxu0 %v366
  %412 = vmatmul.mubr.bf16.gmra.mxu0 %v365
  %v413 = vpop.f32.mrf.mxu0
  %v414 = vadd.f32 0.0, %v413
  %v415 = vpop.f32.mrf.mxu0
  %v416 = vpop.f32.mrf.mxu0
  %v417 = vpop.f32.mrf.mxu0
  %418 = vdwg.mxu0
  %v419 = vadd.f32 %v406, %v409
  %v420 = vadd.f32 %v419, %v414
  %421 = vst [vmem:[%s2 + $0x8] sm:$0xff] %v420
  %v422 = vld [vmem:[%s0 + $0x2] sm:$0x1]
  %v423 = vlaneseq
  %v424 = vshrl.u32 %v423, 7
  %v425 = vsub.s32 0, %v424
  %v426 = vrot.slane %v422, %v425
  %vm427 = vcmp.eq.s32.totalorder %v426, %v13
  %vm428 = vcmp.eq.s32.totalorder %v426, %v14
  %vm429 = vcmp.eq.s32.totalorder %v426, %v15
  %vm430 = vcmp.eq.s32.totalorder %v426, %v16
  %vm431 = vcmp.eq.s32.totalorder %v426, %v17
  %vm432 = vcmp.eq.s32.totalorder %v426, %v18
  %vm433 = vcmp.eq.s32.totalorder %v426, %v19
  %vm434 = vcmp.eq.s32.totalorder %v426, %v20
  %vm435 = vcmp.eq.s32.totalorder %v426, %v21
  %vm436 = vcmp.eq.s32.totalorder %v426, %v22
  %vm437 = vcmp.eq.s32.totalorder %v426, %v23
  %vm438 = vcmp.eq.s32.totalorder %v426, %v24
  %vm439 = vcmp.eq.s32.totalorder %v426, %v25
  %vm440 = vcmp.eq.s32.totalorder %v426, %v26
  %vm441 = vcmp.eq.s32.totalorder %v426, %v27
  %vm442 = vcmp.eq.s32.totalorder %v426, %v28
  %vm443 = vcmp.eq.s32.totalorder %v426, %v29
  %vm444 = vcmp.eq.s32.totalorder %v426, %v30
  %vm445 = vcmp.eq.s32.totalorder %v426, %v31
  %vm446 = vcmp.eq.s32.totalorder %v426, %v32
  %vm447 = vcmp.eq.s32.totalorder %v426, %v33
  %vm448 = vcmp.eq.s32.totalorder %v426, %v34
  %vm449 = vcmp.eq.s32.totalorder %v426, %v35
  %vm450 = vcmp.eq.s32.totalorder %v426, %v36
  %vm451 = vcmp.eq.s32.totalorder %v426, %v37
  %vm452 = vcmp.eq.s32.totalorder %v426, %v38
  %vm453 = vcmp.eq.s32.totalorder %v426, %v39
  %vm454 = vcmp.eq.s32.totalorder %v426, %v40
  %vm455 = vcmp.eq.s32.totalorder %v426, %v41
  %vm456 = vcmp.eq.s32.totalorder %v426, %v42
  %vm457 = vcmp.eq.s32.totalorder %v426, %v43
  %vm458 = vcmp.eq.s32.totalorder %v426, %v44
  %v459 = vsel %vm427, 1, 0
  %v460 = vsel %vm428, 1, 0
  %v461 = vsel %vm429, 1, 0
  %v462 = vsel %vm430, 1, 0
  %v463 = vsel %vm431, 1, 0
  %v464 = vsel %vm432, 1, 0
  %v465 = vsel %vm433, 1, 0
  %v466 = vsel %vm434, 1, 0
  %v467 = vsel %vm435, 1, 0
  %v468 = vsel %vm436, 1, 0
  %v469 = vsel %vm437, 1, 0
  %v470 = vsel %vm438, 1, 0
  %v471 = vsel %vm439, 1, 0
  %v472 = vsel %vm440, 1, 0
  %v473 = vsel %vm441, 1, 0
  %v474 = vsel %vm442, 1, 0
  %v475 = vsel %vm443, 1, 0
  %v476 = vsel %vm444, 1, 0
  %v477 = vsel %vm445, 1, 0
  %v478 = vsel %vm446, 1, 0
  %v479 = vsel %vm447, 1, 0
  %v480 = vsel %vm448, 1, 0
  %v481 = vsel %vm449, 1, 0
  %v482 = vsel %vm450, 1, 0
  %v483 = vsel %vm451, 1, 0
  %v484 = vsel %vm452, 1, 0
  %v485 = vsel %vm453, 1, 0
  %v486 = vsel %vm454, 1, 0
  %v487 = vsel %vm455, 1, 0
  %v488 = vsel %vm456, 1, 0
  %v489 = vsel %vm457, 1, 0
  %v490 = vsel %vm458, 1, 0
  %v491 = vcvt.s32.f32 %v459
  %v492 = vcvt.s32.f32 %v460
  %v493 = vcvt.s32.f32 %v461
  %v494 = vcvt.s32.f32 %v462
  %v495 = vcvt.s32.f32 %v463
  %v496 = vcvt.s32.f32 %v464
  %v497 = vcvt.s32.f32 %v465
  %v498 = vcvt.s32.f32 %v466
  %v499 = vcvt.s32.f32 %v467
  %v500 = vcvt.s32.f32 %v468
  %v501 = vcvt.s32.f32 %v469
  %v502 = vcvt.s32.f32 %v470
  %v503 = vcvt.s32.f32 %v471
  %v504 = vcvt.s32.f32 %v472
  %v505 = vcvt.s32.f32 %v473
  %v506 = vcvt.s32.f32 %v474
  %v507 = vcvt.s32.f32 %v475
  %v508 = vcvt.s32.f32 %v476
  %v509 = vcvt.s32.f32 %v477
  %v510 = vcvt.s32.f32 %v478
  %v511 = vcvt.s32.f32 %v479
  %v512 = vcvt.s32.f32 %v480
  %v513 = vcvt.s32.f32 %v481
  %v514 = vcvt.s32.f32 %v482
  %v515 = vcvt.s32.f32 %v483
  %v516 = vcvt.s32.f32 %v484
  %v517 = vcvt.s32.f32 %v485
  %v518 = vcvt.s32.f32 %v486
  %v519 = vcvt.s32.f32 %v487
  %v520 = vcvt.s32.f32 %v488
  %v521 = vcvt.s32.f32 %v489
  %v522 = vcvt.s32.f32 %v490
  %v523 = vpack.c.bf16 %v492, %v491
  %v524 = vpack.c.bf16 %v494, %v493
  %v525 = vpack.c.bf16 %v496, %v495
  %v526 = vpack.c.bf16 %v498, %v497
  %v527 = vpack.c.bf16 %v500, %v499
  %v528 = vpack.c.bf16 %v502, %v501
  %v529 = vpack.c.bf16 %v504, %v503
  %v530 = vpack.c.bf16 %v506, %v505
  %v531 = vpack.c.bf16 %v508, %v507
  %v532 = vpack.c.bf16 %v510, %v509
  %v533 = vpack.c.bf16 %v512, %v511
  %v534 = vpack.c.bf16 %v514, %v513
  %v535 = vpack.c.bf16 %v516, %v515
  %v536 = vpack.c.bf16 %v518, %v517
  %v537 = vpack.c.bf16 %v520, %v519
  %v538 = vpack.c.bf16 %v522, %v521
  %s539 = scalar_lea.vmem %s1, 48
  %v540 = vld [vmem:[%s539] sm:$0xff]
  %v541 = vld [vmem:[%s539 + $0x8] sm:$0xff]
  %v542 = vld [vmem:[%s539 + $0x10] sm:$0xff]
  %v546 = vunpack.c.l.b16 %v540
  %v547 = vunpack.c.h.b16 %v540
  %v548 = vunpack.c.l.b16 %v541
  %v549 = vunpack.c.h.b16 %v541
  %v550 = vunpack.c.l.b16 %v542
  %v551 = vunpack.c.h.b16 %v542
  %v552 = vpack.c.b16 %v548, %v546
  %v553 = vpack.c.b16 %v549, %v547
  %v554 = vpack.c.b16 %v550, %v550
  %v555 = vpack.c.b16 %v551, %v551
  %560 = vmatprep.subr.bf16.mxu0 0
  %561 = vmatpush1.bf16.msra.mxu0 %v530
  %562 = vmatprep.subr.bf16.mxu0 0
  %563 = vmatpush1.bf16.msra.mxu0 %v529
  %564 = vmatprep.subr.bf16.mxu0 0
  %565 = vmatpush1.bf16.msra.mxu0 %v528
  %566 = vmatprep.subr.bf16.mxu0 0
  %567 = vmatpush1.bf16.msra.mxu0 %v527
  %568 = vmatprep.subr.bf16.mxu0 0
  %569 = vmatpush1.bf16.msra.mxu0 %v526
  %570 = vmatprep.subr.bf16.mxu0 0
  %571 = vmatpush1.bf16.msra.mxu0 %v525
  %572 = vmatprep.subr.bf16.mxu0 0
  %573 = vmatpush1.bf16.msra.mxu0 %v524
  %574 = vmatprep.subr.bf16.mxu0 0
  %575 = vmatpush1.bf16.msra.mxu0 %v523
  %576 = vmatprep.subr.bf16.mxu0 0
  %577 = vmatpush2.bf16.msra.mxu0 %v538
  %578 = vmatprep.subr.bf16.mxu0 0
  %579 = vmatpush2.bf16.msra.mxu0 %v537
  %580 = vmatprep.subr.bf16.mxu0 0
  %581 = vmatpush2.bf16.msra.mxu0 %v536
  %582 = vmatprep.subr.bf16.mxu0 0
  %583 = vmatpush2.bf16.msra.mxu0 %v535
  %584 = vmatprep.subr.bf16.mxu0 0
  %585 = vmatpush2.bf16.msra.mxu0 %v534
  %586 = vmatprep.subr.bf16.mxu0 0
  %587 = vmatpush2.bf16.msra.mxu0 %v533
  %588 = vmatprep.subr.bf16.mxu0 0
  %589 = vmatpush2.bf16.msra.mxu0 %v532
  %590 = vmatprep.subr.bf16.mxu0 0
  %591 = vmatpush2.bf16.msra.mxu0 %v531
  %592 = vmatprep.mubr.bf16.mxu0 %v553
  %593 = vmatmul.mubr.bf16.gmra.mxu0 %v552
  %v594 = vpop.f32.mrf.mxu0
  %v595 = vadd.f32 0.0, %v594
  %v596 = vpop.f32.mrf.mxu0
  %v597 = vpop.f32.mrf.mxu0
  %v598 = vadd.f32 0.0, %v597
  %v599 = vpop.f32.mrf.mxu0
  %600 = vmatprep.mubr.bf16.mxu0 %v555
  %601 = vmatmul.mubr.bf16.gmra.mxu0 %v554
  %v602 = vpop.f32.mrf.mxu0
  %v603 = vadd.f32 0.0, %v602
  %v604 = vpop.f32.mrf.mxu0
  %v605 = vpop.f32.mrf.mxu0
  %v606 = vpop.f32.mrf.mxu0
  %607 = vdwg.mxu0
  %v608 = vadd.f32 %v595, %v598
  %v609 = vadd.f32 %v608, %v603
  %610 = vst [vmem:[%s2 + $0x10] sm:$0xff] %v609
  %v611 = vld [vmem:[%s0 + $0x3] sm:$0x1]
  %v612 = vlaneseq
  %v613 = vshrl.u32 %v612, 7
  %v614 = vsub.s32 0, %v613
  %v615 = vrot.slane %v611, %v614
  %vm616 = vcmp.eq.s32.totalorder %v615, %v13
  %vm617 = vcmp.eq.s32.totalorder %v615, %v14
  %vm618 = vcmp.eq.s32.totalorder %v615, %v15
  %vm619 = vcmp.eq.s32.totalorder %v615, %v16
  %vm620 = vcmp.eq.s32.totalorder %v615, %v17
  %vm621 = vcmp.eq.s32.totalorder %v615, %v18
  %vm622 = vcmp.eq.s32.totalorder %v615, %v19
  %vm623 = vcmp.eq.s32.totalorder %v615, %v20
  %vm624 = vcmp.eq.s32.totalorder %v615, %v21
  %vm625 = vcmp.eq.s32.totalorder %v615, %v22
  %vm626 = vcmp.eq.s32.totalorder %v615, %v23
  %vm627 = vcmp.eq.s32.totalorder %v615, %v24
  %vm628 = vcmp.eq.s32.totalorder %v615, %v25
  %vm629 = vcmp.eq.s32.totalorder %v615, %v26
  %vm630 = vcmp.eq.s32.totalorder %v615, %v27
  %vm631 = vcmp.eq.s32.totalorder %v615, %v28
  %vm632 = vcmp.eq.s32.totalorder %v615, %v29
  %vm633 = vcmp.eq.s32.totalorder %v615, %v30
  %vm634 = vcmp.eq.s32.totalorder %v615, %v31
  %vm635 = vcmp.eq.s32.totalorder %v615, %v32
  %vm636 = vcmp.eq.s32.totalorder %v615, %v33
  %vm637 = vcmp.eq.s32.totalorder %v615, %v34
  %vm638 = vcmp.eq.s32.totalorder %v615, %v35
  %vm639 = vcmp.eq.s32.totalorder %v615, %v36
  %vm640 = vcmp.eq.s32.totalorder %v615, %v37
  %vm641 = vcmp.eq.s32.totalorder %v615, %v38
  %vm642 = vcmp.eq.s32.totalorder %v615, %v39
  %vm643 = vcmp.eq.s32.totalorder %v615, %v40
  %vm644 = vcmp.eq.s32.totalorder %v615, %v41
  %vm645 = vcmp.eq.s32.totalorder %v615, %v42
  %vm646 = vcmp.eq.s32.totalorder %v615, %v43
  %vm647 = vcmp.eq.s32.totalorder %v615, %v44
  %v648 = vsel %vm616, 1, 0
  %v649 = vsel %vm617, 1, 0
  %v650 = vsel %vm618, 1, 0
  %v651 = vsel %vm619, 1, 0
  %v652 = vsel %vm620, 1, 0
  %v653 = vsel %vm621, 1, 0
  %v654 = vsel %vm622, 1, 0
  %v655 = vsel %vm623, 1, 0
  %v656 = vsel %vm624, 1, 0
  %v657 = vsel %vm625, 1, 0
  %v658 = vsel %vm626, 1, 0
  %v659 = vsel %vm627, 1, 0
  %v660 = vsel %vm628, 1, 0
  %v661 = vsel %vm629, 1, 0
  %v662 = vsel %vm630, 1, 0
  %v663 = vsel %vm631, 1, 0
  %v664 = vsel %vm632, 1, 0
  %v665 = vsel %vm633, 1, 0
  %v666 = vsel %vm634, 1, 0
  %v667 = vsel %vm635, 1, 0
  %v668 = vsel %vm636, 1, 0
  %v669 = vsel %vm637, 1, 0
  %v670 = vsel %vm638, 1, 0
  %v671 = vsel %vm639, 1, 0
  %v672 = vsel %vm640, 1, 0
  %v673 = vsel %vm641, 1, 0
  %v674 = vsel %vm642, 1, 0
  %v675 = vsel %vm643, 1, 0
  %v676 = vsel %vm644, 1, 0
  %v677 = vsel %vm645, 1, 0
  %v678 = vsel %vm646, 1, 0
  %v679 = vsel %vm647, 1, 0
  %v680 = vcvt.s32.f32 %v648
  %v681 = vcvt.s32.f32 %v649
  %v682 = vcvt.s32.f32 %v650
  %v683 = vcvt.s32.f32 %v651
  %v684 = vcvt.s32.f32 %v652
  %v685 = vcvt.s32.f32 %v653
  %v686 = vcvt.s32.f32 %v654
  %v687 = vcvt.s32.f32 %v655
  %v688 = vcvt.s32.f32 %v656
  %v689 = vcvt.s32.f32 %v657
  %v690 = vcvt.s32.f32 %v658
  %v691 = vcvt.s32.f32 %v659
  %v692 = vcvt.s32.f32 %v660
  %v693 = vcvt.s32.f32 %v661
  %v694 = vcvt.s32.f32 %v662
  %v695 = vcvt.s32.f32 %v663
  %v696 = vcvt.s32.f32 %v664
  %v697 = vcvt.s32.f32 %v665
  %v698 = vcvt.s32.f32 %v666
  %v699 = vcvt.s32.f32 %v667
  %v700 = vcvt.s32.f32 %v668
  %v701 = vcvt.s32.f32 %v669
  %v702 = vcvt.s32.f32 %v670
  %v703 = vcvt.s32.f32 %v671
  %v704 = vcvt.s32.f32 %v672
  %v705 = vcvt.s32.f32 %v673
  %v706 = vcvt.s32.f32 %v674
  %v707 = vcvt.s32.f32 %v675
  %v708 = vcvt.s32.f32 %v676
  %v709 = vcvt.s32.f32 %v677
  %v710 = vcvt.s32.f32 %v678
  %v711 = vcvt.s32.f32 %v679
  %v712 = vpack.c.bf16 %v681, %v680
  %v713 = vpack.c.bf16 %v683, %v682
  %v714 = vpack.c.bf16 %v685, %v684
  %v715 = vpack.c.bf16 %v687, %v686
  %v716 = vpack.c.bf16 %v689, %v688
  %v717 = vpack.c.bf16 %v691, %v690
  %v718 = vpack.c.bf16 %v693, %v692
  %v719 = vpack.c.bf16 %v695, %v694
  %v720 = vpack.c.bf16 %v697, %v696
  %v721 = vpack.c.bf16 %v699, %v698
  %v722 = vpack.c.bf16 %v701, %v700
  %v723 = vpack.c.bf16 %v703, %v702
  %v724 = vpack.c.bf16 %v705, %v704
  %v725 = vpack.c.bf16 %v707, %v706
  %v726 = vpack.c.bf16 %v709, %v708
  %v727 = vpack.c.bf16 %v711, %v710
  %s728 = scalar_lea.vmem %s1, 72
  %v729 = vld [vmem:[%s728] sm:$0xff]
  %v730 = vld [vmem:[%s728 + $0x8] sm:$0xff]
  %v731 = vld [vmem:[%s728 + $0x10] sm:$0xff]
  %v735 = vunpack.c.l.b16 %v729
  %v736 = vunpack.c.h.b16 %v729
  %v737 = vunpack.c.l.b16 %v730
  %v738 = vunpack.c.h.b16 %v730
  %v739 = vunpack.c.l.b16 %v731
  %v740 = vunpack.c.h.b16 %v731
  %v741 = vpack.c.b16 %v737, %v735
  %v742 = vpack.c.b16 %v738, %v736
  %v743 = vpack.c.b16 %v739, %v739
  %v744 = vpack.c.b16 %v740, %v740
  %749 = vmatprep.subr.bf16.mxu0 0
  %750 = vmatpush1.bf16.msra.mxu0 %v719
  %751 = vmatprep.subr.bf16.mxu0 0
  %752 = vmatpush1.bf16.msra.mxu0 %v718
  %753 = vmatprep.subr.bf16.mxu0 0
  %754 = vmatpush1.bf16.msra.mxu0 %v717
  %755 = vmatprep.subr.bf16.mxu0 0
  %756 = vmatpush1.bf16.msra.mxu0 %v716
  %757 = vmatprep.subr.bf16.mxu0 0
  %758 = vmatpush1.bf16.msra.mxu0 %v715
  %759 = vmatprep.subr.bf16.mxu0 0
  %760 = vmatpush1.bf16.msra.mxu0 %v714
  %761 = vmatprep.subr.bf16.mxu0 0
  %762 = vmatpush1.bf16.msra.mxu0 %v713
  %763 = vmatprep.subr.bf16.mxu0 0
  %764 = vmatpush1.bf16.msra.mxu0 %v712
  %765 = vmatprep.subr.bf16.mxu0 0
  %766 = vmatpush2.bf16.msra.mxu0 %v727
  %767 = vmatprep.subr.bf16.mxu0 0
  %768 = vmatpush2.bf16.msra.mxu0 %v726
  %769 = vmatprep.subr.bf16.mxu0 0
  %770 = vmatpush2.bf16.msra.mxu0 %v725
  %771 = vmatprep.subr.bf16.mxu0 0
  %772 = vmatpush2.bf16.msra.mxu0 %v724
  %773 = vmatprep.subr.bf16.mxu0 0
  %774 = vmatpush2.bf16.msra.mxu0 %v723
  %775 = vmatprep.subr.bf16.mxu0 0
  %776 = vmatpush2.bf16.msra.mxu0 %v722
  %777 = vmatprep.subr.bf16.mxu0 0
  %778 = vmatpush2.bf16.msra.mxu0 %v721
  %779 = vmatprep.subr.bf16.mxu0 0
  %780 = vmatpush2.bf16.msra.mxu0 %v720
  %781 = vmatprep.mubr.bf16.mxu0 %v742
  %782 = vmatmul.mubr.bf16.gmra.mxu0 %v741
  %v783 = vpop.f32.mrf.mxu0
  %v784 = vadd.f32 0.0, %v783
  %v785 = vpop.f32.mrf.mxu0
  %v786 = vpop.f32.mrf.mxu0
  %v787 = vadd.f32 0.0, %v786
  %v788 = vpop.f32.mrf.mxu0
  %789 = vmatprep.mubr.bf16.mxu0 %v744
  %790 = vmatmul.mubr.bf16.gmra.mxu0 %v743
  %v791 = vpop.f32.mrf.mxu0
  %v792 = vadd.f32 0.0, %v791
  %v793 = vpop.f32.mrf.mxu0
  %v794 = vpop.f32.mrf.mxu0
  %v795 = vpop.f32.mrf.mxu0
  %796 = vdwg.mxu0
  %v797 = vadd.f32 %v784, %v787
  %v798 = vadd.f32 %v797, %v792
  %799 = vst [vmem:[%s2 + $0x18] sm:$0xff] %v798
  // Predicated region
  $region10: #{itemcode_jpq_forward.1} parent=0 // pred_check
    _
  $region11: #{itemcode_jpq_forward.1} parent=0 // pred_check_branch
    %801 = sbr.rel (0) target = $region13
  $region12: #{itemcode_jpq_forward.1} parent=0 // pred_region
    _
  $region13: #{itemcode_jpq_forward.1} parent=0 // pred_fallthru
    _
  // Predicated region
  $region14: #{itemcode_jpq_forward.1} parent=0 // pred_check
    _
  $region15: #{itemcode_jpq_forward.1} parent=0 // pred_check_branch
    %803 = sbr.rel (0) target = $region17
  $region16: #{itemcode_jpq_forward.1} parent=0 // pred_region
    _
  $region17: #{itemcode_jpq_forward.1} parent=0 // pred_fallthru
    _

</llo_original>
